<compile_context>
chip_gen: v5e
topology: v5e:2x2
jax: 0.10.0
libtpu: 0.0.40
codegen_flags: <defaults>
</compile_context>

<pallas_src>
import jax
import jax.numpy as jnp
from jax.experimental import pallas as pl
from jax.experimental.pallas import tpu as pltpu


def _fused_heads_kernel(x_ref, w1_ref, b1_ref, w2_ref, b2_ref, out_ref, x2d_ref):
    """Fused 4-head classifier (single invocation, everything in VMEM).

    x_ref  : (S, B, F)   raw LSTM output (seq-major), NOT pre-transposed
    w1_ref : (S*F, G)    concatenated prev_out_* weights, G = 4*H2
    b1_ref : (1, G)      concatenated prev_out_* biases
    w2_ref : (G, O)      block-diagonal out_* weights, O = 4*n_classes
    b2_ref : (1, O)      concatenated out_* biases
    out_ref: (B, O)      all 4 heads' logits in one lane-dense slab
    x2d_ref: (B, S*F)    VMEM scratch holding mixed_features
    """
    S, B, F = x_ref.shape

    # Materialize mixed_features = permute(1,0,2).reshape(B, S*F) into VMEM
    # scratch via S static slice-stores.  This is pure data movement (masked
    # vector stores + lane shifts), with no MXU push/pop per step and no
    # serial accumulate chain -- replacing the previous 8x K=4 matmul loop.
    for s in range(S):  # S is small & static -> unrolled stores
        x2d_ref[:, s * F:(s + 1) * F] = x_ref[s]

    # ONE matmul with K = S*F for all 4 heads' first Linear layers.
    hidden = jnp.dot(x2d_ref[...], w1_ref[...],
                     preferred_element_type=jnp.float32) + b1_ref[...]

    # dropout (p=0.2) is identity at inference time.

    # ONE block-diagonal matmul for all 4 heads' second Linear layers.
    logits = jnp.dot(hidden, w2_ref[...],
                     preferred_element_type=jnp.float32) + b2_ref[...]
    out_ref[...] = logits.astype(out_ref.dtype)


def classifier_lstm_emotion_forward(fc_input, fused_params, split_heads=True):
    """fc_input: (S, B, F) float32.

    Returns a tuple of 4 logits (B, n_classes) if split_heads (PyTorch parity),
    otherwise the fused lane-dense (B, 4*n_classes) slab.
    """
    S, B, F = fc_input.shape
    w1 = fused_params["w1"]   # (S*F, 4*H2)
    b1 = fused_params["b1"]   # (1, 4*H2)
    w2 = fused_params["w2"]   # (4*H2, 4*C) block-diagonal
    b2 = fused_params["b2"]   # (1, 4*C)

    assert w1.shape[0] == S * F
    n_heads = 4
    G = w1.shape[1]
    O = w2.shape[1]
    C = O // n_heads

    itemsize = 4  # f32
    cost = pl.CostEstimate(
        flops=2 * B * (S * F) * G + 2 * B * G * O,
        transcendentals=0,
        bytes_accessed=(fc_input.size + w1.size + b1.size + w2.size + b2.size
                        + B * O) * itemsize,
    )

    out = pl.pallas_call(
        _fused_heads_kernel,
        out_shape=jax.ShapeDtypeStruct((B, O), jnp.float32),
        # Whole (tiny) arrays resident in VMEM, single kernel invocation.
        in_specs=[pl.BlockSpec(memory_space=pltpu.MemorySpace.VMEM)] * 5,
        out_specs=pl.BlockSpec(memory_space=pltpu.MemorySpace.VMEM),
        scratch_shapes=[pltpu.VMEM((B, S * F), jnp.float32)],
        cost_estimate=cost,
    )(fc_input, w1, b1, w2, b2)

    if not split_heads:
        return out
    # Split the lane-dense slab into the 4 heads (static slices, trivial).
    return tuple(out[:, h * C:(h + 1) * C] for h in range(n_heads))


def init_params(key, seq_len, feat, hidden_d2, n_classes):
    """Synthetic PyTorch-style per-head parameters plus their fused form.

    Per-head (for the reference): W1^T (H, H2), b1 (1, H2), W2^T (H2, C), b2 (1, C).
    Fused (for the kernel):
      w1: (S*F, 4*H2)   -- concat along output dim (row index = s*F + f already
                           matches PyTorch's permute+view flattening order)
      b1: (1, 4*H2)
      w2: (4*H2, 4*C)   -- block diagonal
      b2: (1, 4*C)
    """
    hidden_d = seq_len * feat
    keys = jax.random.split(key, 16)
    w1_list, b1_list, w2_list, b2_list = [], [], [], []
    k = 0
    scale1 = 1.0 / jnp.sqrt(hidden_d)
    scale2 = 1.0 / jnp.sqrt(hidden_d2)
    for _ in range(4):  # humour, sarcasm, offensive, motivation
        w1_list.append(jax.random.uniform(keys[k], (hidden_d, hidden_d2),
                                          jnp.float32, -scale1, scale1)); k += 1
        b1_list.append(jax.random.uniform(keys[k], (1, hidden_d2),
                                          jnp.float32, -scale1, scale1)); k += 1
        w2_list.append(jax.random.uniform(keys[k], (hidden_d2, n_classes),
                                          jnp.float32, -scale2, scale2)); k += 1
        b2_list.append(jax.random.uniform(keys[k], (1, n_classes),
                                          jnp.float32, -scale2, scale2)); k += 1

    # ---- fuse (done once at parameter-prep time; free at inference) ----
    w1_fused = jnp.concatenate(w1_list, axis=1)              # (S*F, 4*H2)
    b1_fused = jnp.concatenate(b1_list, axis=1)              # (1, 4*H2)

    w2_bd = jnp.zeros((4 * hidden_d2, 4 * n_classes), jnp.float32)
    for h in range(4):
        w2_bd = w2_bd.at[h * hidden_d2:(h + 1) * hidden_d2,
                         h * n_classes:(h + 1) * n_classes].set(w2_list[h])
    b2_fused = jnp.concatenate(b2_list, axis=1)              # (1, 4*C)

    fused = {"w1": w1_fused, "b1": b1_fused, "w2": w2_bd, "b2": b2_fused}
    heads = {"w1": w1_list, "b1": b1_list, "w2": w2_list, "b2": b2_list}
    return fused, heads


def _reference(fc_input, head_params):
    """Plain-JAX mirror of the PyTorch forward (inference mode)."""
    S, B, F = fc_input.shape
    mixed = jnp.transpose(fc_input, (1, 0, 2)).reshape(B, S * F)
    outs = []
    for h in range(4):
        hid = mixed @ head_params["w1"][h] + head_params["b1"][h]
        outs.append(hid @ head_params["w2"][h] + head_params["b2"][h])
    return tuple(outs)


if __name__ == "__main__":
    # Small shapes consistent with the forward: seq=8, feat=4, batch=2,
    # so hidden_d = seq*feat = 32; hidden_d2 = 16; n_classes = 4.
    S, B, F = 8, 2, 4
    hidden_d2, n_classes = 16, 4

    key = jax.random.PRNGKey(0)
    k_in, k_p = jax.random.split(key)
    fc_input = jax.random.normal(k_in, (S, B, F), dtype=jnp.float32)
    fused_params, head_params = init_params(k_p, S, F, hidden_d2, n_classes)

    logits = classifier_lstm_emotion_forward(fc_input, fused_params)
    logits = jax.block_until_ready(logits)

    # sanity check against plain-JAX reference
    ref = _reference(fc_input, head_params)
    for a, b in zip(logits, ref):
        assert a.shape == b.shape
        assert jnp.allclose(a, b, atol=1e-5), "mismatch vs reference"

    # TODO(synk): nn.Dropout(p=0.2) is treated as inference-mode identity.
    print("KERNEL_OK")
</pallas_src>

<mosaic_0001>
module attributes {stable_mosaic.version = 11 : i64} {
  func.func @_fused_heads_kernel(%arg0: memref<8x2x4xf32, #tpu.memory_space<vmem>>, %arg1: memref<32x64xf32, #tpu.memory_space<vmem>>, %arg2: memref<1x64xf32, #tpu.memory_space<vmem>>, %arg3: memref<64x16xf32, #tpu.memory_space<vmem>>, %arg4: memref<1x16xf32, #tpu.memory_space<vmem>>, %arg5: memref<2x16xf32, #tpu.memory_space<vmem>>, %arg6: memref<2x32xf32, #tpu.memory_space<vmem>>) attributes {dimension_semantics = [], scalar_prefetch = 0 : i64, scratch_operands = 1 : i64, tpu.core_type = #tpu.core_type<tc>} {
    %c0 = arith.constant 0 : index
    %c0_0 = arith.constant 0 : index
    %c0_1 = arith.constant 0 : index
    %0 = vector.load %arg0[%c0, %c0_0, %c0_1] : memref<8x2x4xf32, #tpu.memory_space<vmem>>, vector<1x2x4xf32>
    %1 = vector.shape_cast %0 : vector<1x2x4xf32> to vector<2x4xf32>
    %c0_2 = arith.constant 0 : index
    %c0_3 = arith.constant 0 : index
    %2 = vector.load %arg6[%c0_2, %c0_3] : memref<2x32xf32, #tpu.memory_space<vmem>>, vector<2x4xf32>
    tpu.vector_store %arg6[%c0_2, %c0_3], %1 {strides = array<i32>} : memref<2x32xf32, #tpu.memory_space<vmem>>, vector<2x4xf32>,
    %c1 = arith.constant 1 : index
    %c0_4 = arith.constant 0 : index
    %c0_5 = arith.constant 0 : index
    %3 = vector.load %arg0[%c1, %c0_4, %c0_5] : memref<8x2x4xf32, #tpu.memory_space<vmem>>, vector<1x2x4xf32>
    %4 = vector.shape_cast %3 : vector<1x2x4xf32> to vector<2x4xf32>
    %c0_6 = arith.constant 0 : index
    %c4 = arith.constant 4 : index
    %5 = vector.load %arg6[%c0_6, %c4] : memref<2x32xf32, #tpu.memory_space<vmem>>, vector<2x4xf32>
    tpu.vector_store %arg6[%c0_6, %c4], %4 {strides = array<i32>} : memref<2x32xf32, #tpu.memory_space<vmem>>, vector<2x4xf32>,
    %c2 = arith.constant 2 : index
    %c0_7 = arith.constant 0 : index
    %c0_8 = arith.constant 0 : index
    %6 = vector.load %arg0[%c2, %c0_7, %c0_8] : memref<8x2x4xf32, #tpu.memory_space<vmem>>, vector<1x2x4xf32>
    %7 = vector.shape_cast %6 : vector<1x2x4xf32> to vector<2x4xf32>
    %c0_9 = arith.constant 0 : index
    %c8 = arith.constant 8 : index
    %8 = vector.load %arg6[%c0_9, %c8] : memref<2x32xf32, #tpu.memory_space<vmem>>, vector<2x4xf32>
    tpu.vector_store %arg6[%c0_9, %c8], %7 {strides = array<i32>} : memref<2x32xf32, #tpu.memory_space<vmem>>, vector<2x4xf32>,
    %c3 = arith.constant 3 : index
    %c0_10 = arith.constant 0 : index
    %c0_11 = arith.constant 0 : index
    %9 = vector.load %arg0[%c3, %c0_10, %c0_11] : memref<8x2x4xf32, #tpu.memory_space<vmem>>, vector<1x2x4xf32>
    %10 = vector.shape_cast %9 : vector<1x2x4xf32> to vector<2x4xf32>
    %c0_12 = arith.constant 0 : index
    %c12 = arith.constant 12 : index
    %11 = vector.load %arg6[%c0_12, %c12] : memref<2x32xf32, #tpu.memory_space<vmem>>, vector<2x4xf32>
    tpu.vector_store %arg6[%c0_12, %c12], %10 {strides = array<i32>} : memref<2x32xf32, #tpu.memory_space<vmem>>, vector<2x4xf32>,
    %c4_13 = arith.constant 4 : index
    %c0_14 = arith.constant 0 : index
    %c0_15 = arith.constant 0 : index
    %12 = vector.load %arg0[%c4_13, %c0_14, %c0_15] : memref<8x2x4xf32, #tpu.memory_space<vmem>>, vector<1x2x4xf32>
    %13 = vector.shape_cast %12 : vector<1x2x4xf32> to vector<2x4xf32>
    %c0_16 = arith.constant 0 : index
    %c16 = arith.constant 16 : index
    %14 = vector.load %arg6[%c0_16, %c16] : memref<2x32xf32, #tpu.memory_space<vmem>>, vector<2x4xf32>
    tpu.vector_store %arg6[%c0_16, %c16], %13 {strides = array<i32>} : memref<2x32xf32, #tpu.memory_space<vmem>>, vector<2x4xf32>,
    %c5 = arith.constant 5 : index
    %c0_17 = arith.constant 0 : index
    %c0_18 = arith.constant 0 : index
    %15 = vector.load %arg0[%c5, %c0_17, %c0_18] : memref<8x2x4xf32, #tpu.memory_space<vmem>>, vector<1x2x4xf32>
    %16 = vector.shape_cast %15 : vector<1x2x4xf32> to vector<2x4xf32>
    %c0_19 = arith.constant 0 : index
    %c20 = arith.constant 20 : index
    %17 = vector.load %arg6[%c0_19, %c20] : memref<2x32xf32, #tpu.memory_space<vmem>>, vector<2x4xf32>
    tpu.vector_store %arg6[%c0_19, %c20], %16 {strides = array<i32>} : memref<2x32xf32, #tpu.memory_space<vmem>>, vector<2x4xf32>,
    %c6 = arith.constant 6 : index
    %c0_20 = arith.constant 0 : index
    %c0_21 = arith.constant 0 : index
    %18 = vector.load %arg0[%c6, %c0_20, %c0_21] : memref<8x2x4xf32, #tpu.memory_space<vmem>>, vector<1x2x4xf32>
    %19 = vector.shape_cast %18 : vector<1x2x4xf32> to vector<2x4xf32>
    %c0_22 = arith.constant 0 : index
    %c24 = arith.constant 24 : index
    %20 = vector.load %arg6[%c0_22, %c24] : memref<2x32xf32, #tpu.memory_space<vmem>>, vector<2x4xf32>
    tpu.vector_store %arg6[%c0_22, %c24], %19 {strides = array<i32>} : memref<2x32xf32, #tpu.memory_space<vmem>>, vector<2x4xf32>,
    %c7 = arith.constant 7 : index
    %c0_23 = arith.constant 0 : index
    %c0_24 = arith.constant 0 : index
    %21 = vector.load %arg0[%c7, %c0_23, %c0_24] : memref<8x2x4xf32, #tpu.memory_space<vmem>>, vector<1x2x4xf32>
    %22 = vector.shape_cast %21 : vector<1x2x4xf32> to vector<2x4xf32>
    %c0_25 = arith.constant 0 : index
    %c28 = arith.constant 28 : index
    %23 = vector.load %arg6[%c0_25, %c28] : memref<2x32xf32, #tpu.memory_space<vmem>>, vector<2x4xf32>
    tpu.vector_store %arg6[%c0_25, %c28], %22 {strides = array<i32>} : memref<2x32xf32, #tpu.memory_space<vmem>>, vector<2x4xf32>,
    %c0_26 = arith.constant 0 : index
    %c0_27 = arith.constant 0 : index
    %24 = vector.load %arg6[%c0_26, %c0_27] : memref<2x32xf32, #tpu.memory_space<vmem>>, vector<2x32xf32>
    %c0_28 = arith.constant 0 : index
    %c0_29 = arith.constant 0 : index
    %25 = vector.load %arg1[%c0_28, %c0_29] : memref<32x64xf32, #tpu.memory_space<vmem>>, vector<32x64xf32>
    %cst = arith.constant dense<0.000000e+00> : vector<2x64xf32>
    %26 = tpu.matmul %24, %25, %cst {dimension_numbers = #tpu.dot_dimension_numbers<[1], [0], [0], [1], [0, 0, 1, 1], [], []>} : vector<2x32xf32>, vector<32x64xf32>, vector<2x64xf32> -> vector<2x64xf32>
    %c0_30 = arith.constant 0 : index
    %c0_31 = arith.constant 0 : index
    %27 = vector.load %arg2[%c0_30, %c0_31] : memref<1x64xf32, #tpu.memory_space<vmem>>, vector<1x64xf32>
    %28 = vector.broadcast %27 : vector<1x64xf32> to vector<2x64xf32>
    %29 = arith.addf %26, %28 : vector<2x64xf32>
    %c0_32 = arith.constant 0 : index
    %c0_33 = arith.constant 0 : index
    %30 = vector.load %arg3[%c0_32, %c0_33] : memref<64x16xf32, #tpu.memory_space<vmem>>, vector<64x16xf32>
    %cst_34 = arith.constant dense<0.000000e+00> : vector<2x16xf32>
    %31 = tpu.matmul %29, %30, %cst_34 {dimension_numbers = #tpu.dot_dimension_numbers<[1], [0], [0], [1], [0, 0, 1, 1], [], []>} : vector<2x64xf32>, vector<64x16xf32>, vector<2x16xf32> -> vector<2x16xf32>
    %c0_35 = arith.constant 0 : index
    %c0_36 = arith.constant 0 : index
    %32 = vector.load %arg4[%c0_35, %c0_36] : memref<1x16xf32, #tpu.memory_space<vmem>>, vector<1x16xf32>
    %33 = vector.broadcast %32 : vector<1x16xf32> to vector<2x16xf32>
    %34 = arith.addf %31, %33 : vector<2x16xf32>
    %c0_37 = arith.constant 0 : index
    %c0_38 = arith.constant 0 : index
    %35 = vector.load %arg5[%c0_37, %c0_38] : memref<2x16xf32, #tpu.memory_space<vmem>>, vector<2x16xf32>
    tpu.vector_store %arg5[%c0_37, %c0_38], %34 {strides = array<i32>} : memref<2x16xf32, #tpu.memory_space<vmem>>, vector<2x16xf32>,
    return
  }
}

</mosaic_0001>

<llo_original>
// kernel: tpu_custom_call.1
$region0: #{tpu_custom_call.1}
  #allocation0 [shape = 'u32[]', space=smem, size = 0x4, offset = 0x4, fixed_abs, tag = 'smem constant byte address 0x4 - core index']
  #allocation1 [shape = 'u32[72,128]{1,0:T(1,128)}', space=vmem, size = 0x9000, scoped, tag = 'internal scratch']
  #allocation2 [shape = 'f32[2,32]{1,0:T(2,128)}', space=vmem, size = 0x400, scoped, tag = 'scratch operand']
  %s0 = inlined_call_operand.vmem [shape: f32[8,2,4], index: 0, kind: input, shape index: {}]
  %s1 = inlined_call_operand.vmem [shape: f32[32,64], index: 1, kind: input, shape index: {}]
  %s2 = inlined_call_operand.vmem [shape: f32[1,64], index: 2, kind: input, shape index: {}]
  %s3 = inlined_call_operand.vmem [shape: f32[64,16], index: 3, kind: input, shape index: {}]
  %s4 = inlined_call_operand.vmem [shape: f32[1,16], index: 4, kind: input, shape index: {}]
  %s5 = inlined_call_operand.hbm [shape: f32[2,16], index: 5, kind: output, shape index: {}]
  %s6 = sld [smem:[#allocation0]]
  $region30: #{tpu_custom_call.1} parent=0
    _
  %s8 = ssub.s32 1, %s6
  %s9 = scalar_select 0, %s8, %s6
  $region1: #{tpu_custom_call.1} parent=0
    #allocation3 [shape = 'u8[1024]{0}', space=vmem, size = 0x400, scoped, tag = 'output window, operand 0, single buffered']
    #allocation4 [shape = 's32[1]{0}', space=sflag, size = 0x4, scoped, tag = 'scoped memory for tpu_custom_call.1']
    %10 = vsyncpa [#allocation4], 0
    // Predicated region
    $region2: #{tpu_custom_call.1} parent=1 // pred_check
      _
    $region3: #{tpu_custom_call.1} parent=1 // pred_check_branch
      %12 = sbr.rel (0) target = $region5
    $region4: #{tpu_custom_call.1} parent=1 // pred_region
      _
    $region5: #{tpu_custom_call.1} parent=1 // pred_fallthru
      _
    // Predicated region
    $region6: #{tpu_custom_call.1} parent=1 // pred_check
      _
    $region7: #{tpu_custom_call.1} parent=1 // pred_check_branch
      %14 = sbr.rel (0) target = $region9
    $region8: #{tpu_custom_call.1} parent=1 // pred_region
      _
    $region9: #{tpu_custom_call.1} parent=1 // pred_fallthru
      _
    // Predicated region
    $region10: #{tpu_custom_call.1} parent=1 // pred_check
      _
    $region11: #{tpu_custom_call.1} parent=1 // pred_check_branch
      %16 = sbr.rel (0) target = $region13
    $region12: #{tpu_custom_call.1} parent=1 // pred_region
      _
    $region13: #{tpu_custom_call.1} parent=1 // pred_fallthru
      _
    // Predicated region
    $region14: #{tpu_custom_call.1} parent=1 // pred_check
      _
    $region15: #{tpu_custom_call.1} parent=1 // pred_check_branch
      %18 = sbr.rel (0) target = $region17
    $region16: #{tpu_custom_call.1} parent=1 // pred_region
      _
    $region17: #{tpu_custom_call.1} parent=1 // pred_fallthru
      _
    // Predicated region
    $region18: #{tpu_custom_call.1} parent=1 // pred_check
      _
    $region19: #{tpu_custom_call.1} parent=1 // pred_check_branch
      %20 = sbr.rel (0) target = $region21
    $region20: #{tpu_custom_call.1} parent=1 // pred_region
      _
    $region21: #{tpu_custom_call.1} parent=1 // pred_fallthru
      _
    %v21 = vld [vmem:[%s0] sm:$0x3]
    %vm22 = vcmask 25600
    %23 = vst.msk [vmem:[#allocation2] sm:$0x3] %vm22, %v21
    %s24 = scalar_lea.vmem %s0, 2
    %v25 = vld [vmem:[%s24] sm:$0x3]
    %27 = vrot.lane.b32.xlu0 %v25, 4
    %v28 = vpop.permute.xlu0 %27
    %vm30 = vcmask 58400
    %31 = vst.msk [vmem:[#allocation2] sm:$0x3] %vm30, %v28
    %s32 = scalar_lea.vmem %s0, 4
    %v33 = vld [vmem:[%s32] sm:$0x3]
    %35 = vrot.lane.b32.xlu0 %v33, 8
    %v36 = vpop.permute.xlu0 %35
    %vm38 = vcmask 91200
    %39 = vst.msk [vmem:[#allocation2] sm:$0x3] %vm38, %v36
    %s40 = scalar_lea.vmem %s0, 6
    %v41 = vld [vmem:[%s40] sm:$0x3]
    %43 = vrot.lane.b32.xlu0 %v41, 12
    %v44 = vpop.permute.xlu0 %43
    %vm46 = vcmask 124000
    %47 = vst.msk [vmem:[#allocation2] sm:$0x3] %vm46, %v44
    %s48 = scalar_lea.vmem %s0, 8
    %v49 = vld [vmem:[%s48] sm:$0x3]
    %51 = vrot.lane.b32.xlu0 %v49, 16
    %v52 = vpop.permute.xlu0 %51
    %vm54 = vcmask 156800
    %55 = vst.msk [vmem:[#allocation2] sm:$0x3] %vm54, %v52
    %s56 = scalar_lea.vmem %s0, 10
    %v57 = vld [vmem:[%s56] sm:$0x3]
    %59 = vrot.lane.b32.xlu0 %v57, 20
    %v60 = vpop.permute.xlu0 %59
    %vm62 = vcmask 189600
    %63 = vst.msk [vmem:[#allocation2] sm:$0x3] %vm62, %v60
    %s64 = scalar_lea.vmem %s0, 12
    %v65 = vld [vmem:[%s64] sm:$0x3]
    %67 = vrot.lane.b32.xlu0 %v65, 24
    %v68 = vpop.permute.xlu0 %67
    %vm70 = vcmask 222400
    %71 = vst.msk [vmem:[#allocation2] sm:$0x3] %vm70, %v68
    %s72 = scalar_lea.vmem %s0, 14
    %v73 = vld [vmem:[%s72] sm:$0x3]
    %75 = vrot.lane.b32.xlu0 %v73, 28
    %v76 = vpop.permute.xlu0 %75
    %vm78 = vcmask 255200
    %79 = vst.msk [vmem:[#allocation2] sm:$0x3] %vm78, %v76
    %v80 = vld [vmem:[#allocation2] sm:$0x3]
    %v81 = vld [vmem:[%s1] sm:$0xff]
    %v82 = vld [vmem:[%s1 + $0x8] sm:$0xff]
    %v83 = vld [vmem:[%s1 + $0x10] sm:$0xff]
    %v84 = vld [vmem:[%s1 + $0x18] sm:$0xff]
    %v85 = vld [vmem:[%s2] sm:$0x1]
    %v87 = vperm.slane %v85, 0
    %vm89 = vcmask 261120
    %v91 = vsel %vm89, %v80, 0
    %93 = vmatpush.msra.mxu0 0.0
    %94 = vmatpush.msra.mxu0 0.0
    %95 = vmatpush.msra.mxu0 0.0
    %96 = vmatpush.msra.mxu0 0.0
    %97 = vmatpush.msra.mxu0 0.0
    %98 = vmatpush.msra.mxu0 0.0
    %99 = vmatpush.msra.mxu0 0.0
    %100 = vmatpush.msra.mxu0 0.0
    %101 = vmatpush.msra.mxu0 0.0
    %102 = vmatpush.msra.mxu0 0.0
    %103 = vmatpush.msra.mxu0 0.0
    %104 = vmatpush.msra.mxu0 0.0
    %105 = vmatpush.msra.mxu0 %v84
    %106 = vmatpush.msra.mxu0 %v83
    %107 = vmatpush.msra.mxu0 %v82
    %108 = vmatpush.msra.mxu0 %v81
    %109 = vmatmul.f32.gmra.mxu0 %v91
    %v110 = vpop.f32.mrf.mxu0
    %v111 = vadd.f32 %v87, %v110
    %112 = vdwg.mxu0
    %v113 = vld [vmem:[%s3] sm:$0xff]
    %v114 = vld [vmem:[%s3 + $0x8] sm:$0xff]
    %v115 = vld [vmem:[%s3 + $0x10] sm:$0xff]
    %v116 = vld [vmem:[%s3 + $0x18] sm:$0xff]
    %v117 = vld [vmem:[%s3 + $0x20] sm:$0xff]
    %v118 = vld [vmem:[%s3 + $0x28] sm:$0xff]
    %v119 = vld [vmem:[%s3 + $0x30] sm:$0xff]
    %v120 = vld [vmem:[%s3 + $0x38] sm:$0xff]
    %v121 = vld [vmem:[%s4] sm:$0x1]
    %v123 = vperm.slane %v121, 0
    %vm125 = vcmask 523264
    %v127 = vsel %vm125, %v111, 0
    %129 = vmatpush.msra.mxu0 0.0
    %130 = vmatpush.msra.mxu0 0.0
    %131 = vmatpush.msra.mxu0 0.0
    %132 = vmatpush.msra.mxu0 0.0
    %133 = vmatpush.msra.mxu0 0.0
    %134 = vmatpush.msra.mxu0 0.0
    %135 = vmatpush.msra.mxu0 0.0
    %136 = vmatpush.msra.mxu0 0.0
    %137 = vmatpush.msra.mxu0 %v120
    %138 = vmatpush.msra.mxu0 %v119
    %139 = vmatpush.msra.mxu0 %v118
    %140 = vmatpush.msra.mxu0 %v117
    %141 = vmatpush.msra.mxu0 %v116
    %142 = vmatpush.msra.mxu0 %v115
    %143 = vmatpush.msra.mxu0 %v114
    %144 = vmatpush.msra.mxu0 %v113
    %145 = vmatmul.f32.gmra.mxu0 %v127
    %v146 = vpop.f32.mrf.mxu0
    %v147 = vadd.f32 %v123, %v146
    %148 = vdwg.mxu0
    %vm149 = vcmask 123904
    %150 = vst.msk [vmem:[#allocation3] sm:$0x3] %vm149, %v147
    // Predicated region
    $region22: #{tpu_custom_call.1} parent=1 // pred_check
      _
    $region23: #{tpu_custom_call.1} parent=1 // pred_check_branch
      %152 = sbr.rel (0) target = $region25
    $region24: #{tpu_custom_call.1} parent=1 // pred_region
      %154 = vsyncadd [#allocation4], 0
      %s156 = sshll.u32 [#allocation3], 4
      %s157 = int_to_ptr.vmem [resolvable:$true] %s156
      %s158 = sshll.u32 %s5, 4
      %s159 = int_to_ptr.hbm [resolvable:$true] %s158
      %161 = dma.vmem_to_hbm [thread:$0]  %s157, 32, %s159, [#allocation4]
    $region25: #{tpu_custom_call.1} parent=1 // pred_fallthru
      _
    // Predicated region
    $region26: #{tpu_custom_call.1} parent=1 // pred_check
      _
    $region27: #{tpu_custom_call.1} parent=1 // pred_check_branch
      %163 = sbr.rel (0) target = $region29
    $region28: #{tpu_custom_call.1} parent=1 // pred_region
      %165 = dma.done [#allocation4], 32
    $region29: #{tpu_custom_call.1} parent=1 // pred_fallthru
      _
    %166 = vsyncpa [#allocation4], 1

</llo_original>
